<compile_context>
chip_gen: v7x
topology: tpu7x:2x2x1
jax: 0.10.0
libtpu: 0.0.40
codegen_flags: <defaults>
</compile_context>

<pallas_src>
import math

import jax
import jax.numpy as jnp
from jax import lax
from jax.experimental import pallas as pl
from jax.experimental.pallas import tpu as pltpu


def attention_kernel(x_ref, g_ref, wt_ref, wp_ref, btp_ref, wpsi_ref, scal_ref, o_ref):
    """x_ref/g_ref/o_ref: (1, C, T) tiles, spatial on the lane dim.

    wt_ref/wp_ref: (Ci, C), btp_ref: (Ci, 1) = bt + bp, wpsi_ref: (1, Ci) in VMEM.
    scal_ref: (2,) f32 in SMEM = [prelu_alpha, psi_bias].
    """
    x = x_ref[0].astype(jnp.float32)          # (C, T)
    g = g_ref[0].astype(jnp.float32)          # (C, T)

    # theta(x) and phi(g): 1x1 convs == one matmul each over the channel dim.
    theta = jnp.dot(wt_ref[...], x, preferred_element_type=jnp.float32)   # (Ci, T)
    phi = jnp.dot(wp_ref[...], g, preferred_element_type=jnp.float32)     # (Ci, T)
    s = theta + phi + btp_ref[...]            # fused (bt + bp) bias add

    # PReLU (single shared slope).
    alpha = scal_ref[0]
    f = jnp.where(s >= 0, s, alpha * s)

    # psi(f): 1x1 conv to a single channel, then sigmoid -> gating rate (1, T).
    psi = jnp.dot(wpsi_ref[...], f, preferred_element_type=jnp.float32) + scal_ref[1]
    rate = jax.nn.sigmoid(psi)                # EUP transcendental path

    # Gate the input (broadcast over the channel/sublane dim); lane-dense store.
    o_ref[0] = (x * rate).astype(o_ref.dtype)


def _vmem_budget_and_limit():
    """Per-generation VMEM sizing: live-buffer budget + explicit scoped limit."""
    try:
        cap = int(pltpu.get_tpu_info().vmem_capacity_bytes)
    except Exception:
        cap = 64 << 20  # most conservative (v7x per-TensorCore)
    total_budget = min(cap // 2, 40 << 20)            # v7x: 32 MiB, v5e/v6e: 40 MiB
    vmem_limit = max(32 << 20, min((cap * 3) // 4, total_budget + (16 << 20)))
    return total_budget, vmem_limit


def _pick_hw_tile(hw, c, n, total_budget):
    """Lane-aligned tile of the flattened H*W axis (no exact-divisor requirement).

    Accounts for ~8 live f32 tile-equivalents of size 4*C*T bytes:
    x/g/out double-buffered (6) plus in-kernel f32 intermediates (~2 more).
    """
    if hw <= 128:
        return hw  # full-extent last dim (allowed; tiny spatial)
    t_max = max(128, (total_budget // (4 * max(c, 1) * 8)) // 128 * 128)
    t = min(t_max, (hw // 128) * 128)

    # Keep >= 4 grid steps so the pipeline double-buffers and both v7x TCs get work.
    def steps(tt):
        return n * pl.cdiv(hw, tt)

    while steps(t) < 4 and t > 128:
        t = max(128, ((t // 2) // 128) * 128)
    return t


def attention_block_forward(x_nchw, g_nchw, params):
    """Pallas implementation of AttentionBlock.forward. Inputs/outputs are NCHW."""
    wt, bt, wp, bp, wpsi, bpsi, alpha = params
    N, C, H, W = x_nchw.shape
    Ci = wt.shape[0]
    HW = H * W

    # Flatten spatial onto the lane dim (free reshape, no transposes).
    x3 = x_nchw.reshape(N, C, HW)
    g3 = g_nchw.reshape(N, C, HW)

    # 1x1 OIHW conv weights -> plain matmul weights; pre-sum theta/phi biases.
    wt2 = wt.reshape(Ci, C).astype(jnp.float32)
    wp2 = wp.reshape(Ci, C).astype(jnp.float32)
    btp = (bt + bp).reshape(Ci, 1).astype(jnp.float32)
    wpsi2 = wpsi.reshape(1, Ci).astype(jnp.float32)
    scal = jnp.stack([alpha.reshape(()), bpsi.reshape(())]).astype(jnp.float32)  # (2,)

    total_budget, vmem_limit = _vmem_budget_and_limit()
    T = _pick_hw_tile(HW, C, N, total_budget)
    grid = (N, pl.cdiv(HW, T))                # ragged last block handled by Pallas

    blk = pl.BlockSpec((1, C, T), lambda n, t: (n, 0, t))
    vmem = pl.BlockSpec(memory_space=pltpu.MemorySpace.VMEM)
    smem = pl.BlockSpec(memory_space=pltpu.MemorySpace.SMEM)

    out3 = pl.pallas_call(
        attention_kernel,
        out_shape=jax.ShapeDtypeStruct((N, C, HW), x_nchw.dtype),
        grid=grid,
        in_specs=[blk, blk, vmem, vmem, vmem, vmem, smem],
        out_specs=blk,
        compiler_params=pltpu.CompilerParams(
            dimension_semantics=("parallel", "parallel"),
            vmem_limit_bytes=int(vmem_limit)),
    )(x3, g3, wt2, wp2, btp, wpsi2, scal)

    return out3.reshape(N, C, H, W)


def init_params(key, in_channels):
    """Deterministic init matching he_normal_init + PyTorch defaults."""
    inter = in_channels // 4
    k1, k2, k3 = jax.random.split(key, 3)
    std_tp = math.sqrt(2.0 / (in_channels * 1 * 1))   # kaiming_normal_, fan_in, relu gain
    std_psi = math.sqrt(2.0 / (inter * 1 * 1))
    wt = jax.random.normal(k1, (inter, in_channels, 1, 1), jnp.float32) * std_tp
    bt = jnp.zeros((inter,), jnp.float32)
    wp = jax.random.normal(k2, (inter, in_channels, 1, 1), jnp.float32) * std_tp
    bp = jnp.zeros((inter,), jnp.float32)
    wpsi = jax.random.normal(k3, (1, inter, 1, 1), jnp.float32) * std_psi
    bpsi = jnp.zeros((1,), jnp.float32)
    alpha = jnp.array([0.25], jnp.float32)             # nn.PReLU() default
    return (wt, bt, wp, bp, wpsi, bpsi, alpha)


def _reference_forward(x, g, params):
    """Pure-JAX reference (lax.conv) mirroring the PyTorch module."""
    wt, bt, wp, bp, wpsi, bpsi, alpha = params

    def conv1x1(z, w, b):
        y = lax.conv_general_dilated(z, w, (1, 1), 'VALID',
                                     dimension_numbers=('NCHW', 'OIHW', 'NCHW'))
        return y + b[None, :, None, None]

    theta_x = conv1x1(x, wt, bt)
    phi_g = conv1x1(g, wp, bp)
    s = theta_x + phi_g
    f = jnp.where(s >= 0, s, alpha[0] * s)
    psi_f = conv1x1(f, wpsi, bpsi)
    rate = jax.nn.sigmoid(psi_f)
    return x * rate


if __name__ == "__main__":
    key = jax.random.PRNGKey(0)
    kx, kg, kp = jax.random.split(key, 3)

    # Main check: N=2, in_channels=8 -> inter_channels=2, 16x16 spatial.
    N, C, H, W = 2, 8, 16, 16
    x = jax.random.normal(kx, (N, C, H, W), jnp.float32)
    g = jax.random.normal(kg, (N, C, H, W), jnp.float32)
    params = init_params(kp, C)

    out = attention_block_forward(x, g, params)
    out = jax.block_until_ready(out)
    ref = _reference_forward(x, g, params)
    assert out.shape == (N, C, H, W)
    assert jnp.allclose(out, ref, rtol=1e-4, atol=1e-5), "mismatch vs JAX reference (f32)"

    # Ragged-HW path: H*W not a multiple of 128 -> cdiv grid with masked last block.
    xr = jax.random.normal(kx, (1, C, 15, 15), jnp.float32)
    gr = jax.random.normal(kg, (1, C, 15, 15), jnp.float32)
    out_r = jax.block_until_ready(attention_block_forward(xr, gr, params))
    ref_r = _reference_forward(xr, gr, params)
    assert jnp.allclose(out_r, ref_r, rtol=1e-4, atol=1e-5), "mismatch (ragged HW)"

    # bf16 I/O path (halves HBM traffic; compute stays f32 in-kernel).
    xb = x.astype(jnp.bfloat16)
    gb = g.astype(jnp.bfloat16)
    out_b = jax.block_until_ready(attention_block_forward(xb, gb, params))
    ref_b = _reference_forward(xb.astype(jnp.float32), gb.astype(jnp.float32), params)
    assert out_b.dtype == jnp.bfloat16
    assert jnp.allclose(out_b.astype(jnp.float32), ref_b, rtol=5e-2, atol=5e-2), \
        "mismatch (bf16 I/O)"

    print("KERNEL_OK")
</pallas_src>

<mosaic_0001>
module attributes {stable_mosaic.version = 11 : i64} {
  func.func @attention_kernel(%arg0: i32, %arg1: i32, %arg2: memref<1x8x128xf32, #tpu.memory_space<vmem>>, %arg3: memref<1x8x128xf32, #tpu.memory_space<vmem>>, %arg4: memref<2x8xf32, #tpu.memory_space<vmem>>, %arg5: memref<2x8xf32, #tpu.memory_space<vmem>>, %arg6: memref<2x1xf32, #tpu.memory_space<vmem>>, %arg7: memref<1x2xf32, #tpu.memory_space<vmem>>, %arg8: memref<2xf32, #tpu.memory_space<smem>>, %arg9: memref<1x8x128xf32, #tpu.memory_space<vmem>>) attributes {dimension_semantics = [#tpu.dimension_semantics<parallel>, #tpu.dimension_semantics<parallel>], iteration_bounds = array<i64: 2, 2>, scalar_prefetch = 0 : i64, scratch_operands = 0 : i64, tpu.core_type = #tpu.core_type<tc>, window_params = [{transform_indices = @transform_0, window_bounds = array<i64: 1, 8, 128>}, {transform_indices = @transform_1, window_bounds = array<i64: 1, 8, 128>}, {pipeline_mode = #tpu.pipeline_mode<synchronous>, transform_indices = @transform_2, window_bounds = array<i64: 2, 8>}, {pipeline_mode = #tpu.pipeline_mode<synchronous>, transform_indices = @transform_3, window_bounds = array<i64: 2, 8>}, {pipeline_mode = #tpu.pipeline_mode<synchronous>, transform_indices = @transform_4, window_bounds = array<i64: 2, 1>}, {pipeline_mode = #tpu.pipeline_mode<synchronous>, transform_indices = @transform_5, window_bounds = array<i64: 1, 2>}, {transform_indices = @transform_6, window_bounds = array<i64: 2>}, {transform_indices = @transform_7, window_bounds = array<i64: 1, 8, 128>}]} {
    %c0 = arith.constant 0 : index
    %c0_0 = arith.constant 0 : index
    %c0_1 = arith.constant 0 : index
    %0 = vector.load %arg2[%c0, %c0_0, %c0_1] : memref<1x8x128xf32, #tpu.memory_space<vmem>>, vector<1x8x128xf32>
    %1 = vector.shape_cast %0 : vector<1x8x128xf32> to vector<8x128xf32>
    %c0_2 = arith.constant 0 : index
    %c0_3 = arith.constant 0 : index
    %c0_4 = arith.constant 0 : index
    %2 = vector.load %arg3[%c0_2, %c0_3, %c0_4] : memref<1x8x128xf32, #tpu.memory_space<vmem>>, vector<1x8x128xf32>
    %3 = vector.shape_cast %2 : vector<1x8x128xf32> to vector<8x128xf32>
    %c0_5 = arith.constant 0 : index
    %c0_6 = arith.constant 0 : index
    %4 = vector.load %arg4[%c0_5, %c0_6] : memref<2x8xf32, #tpu.memory_space<vmem>>, vector<2x8xf32>
    %cst = arith.constant dense<0.000000e+00> : vector<2x128xf32>
    %5 = tpu.matmul %4, %1, %cst {dimension_numbers = #tpu.dot_dimension_numbers<[1], [0], [0], [1], [0, 0, 1, 1], [], []>} : vector<2x8xf32>, vector<8x128xf32>, vector<2x128xf32> -> vector<2x128xf32>
    %c0_7 = arith.constant 0 : index
    %c0_8 = arith.constant 0 : index
    %6 = vector.load %arg5[%c0_7, %c0_8] : memref<2x8xf32, #tpu.memory_space<vmem>>, vector<2x8xf32>
    %cst_9 = arith.constant dense<0.000000e+00> : vector<2x128xf32>
    %7 = tpu.matmul %6, %3, %cst_9 {dimension_numbers = #tpu.dot_dimension_numbers<[1], [0], [0], [1], [0, 0, 1, 1], [], []>} : vector<2x8xf32>, vector<8x128xf32>, vector<2x128xf32> -> vector<2x128xf32>
    %8 = arith.addf %5, %7 : vector<2x128xf32>
    %c0_10 = arith.constant 0 : index
    %c0_11 = arith.constant 0 : index
    %9 = vector.load %arg6[%c0_10, %c0_11] : memref<2x1xf32, #tpu.memory_space<vmem>>, vector<2x1xf32>
    %10 = vector.broadcast %9 : vector<2x1xf32> to vector<2x128xf32>
    %11 = arith.addf %8, %10 : vector<2x128xf32>
    %c0_12 = arith.constant 0 : index
    %12 = memref.load %arg8[%c0_12] : memref<2xf32, #tpu.memory_space<smem>>
    %cst_13 = arith.constant 0.000000e+00 : f32
    %13 = vector.broadcast %cst_13 : f32 to vector<2x128xf32>
    %14 = arith.cmpf oge, %11, %13 : vector<2x128xf32>
    %15 = vector.broadcast %12 : f32 to vector<2x128xf32>
    %16 = arith.mulf %15, %11 : vector<2x128xf32>
    %17 = arith.select %14, %11, %16 : vector<2x128xi1>, vector<2x128xf32>
    %c0_14 = arith.constant 0 : index
    %c0_15 = arith.constant 0 : index
    %18 = vector.load %arg7[%c0_14, %c0_15] : memref<1x2xf32, #tpu.memory_space<vmem>>, vector<1x2xf32>
    %cst_16 = arith.constant dense<0.000000e+00> : vector<1x128xf32>
    %19 = tpu.matmul %18, %17, %cst_16 {dimension_numbers = #tpu.dot_dimension_numbers<[1], [0], [0], [1], [0, 0, 1, 1], [], []>} : vector<1x2xf32>, vector<2x128xf32>, vector<1x128xf32> -> vector<1x128xf32>
    %c1 = arith.constant 1 : index
    %20 = memref.load %arg8[%c1] : memref<2xf32, #tpu.memory_space<smem>>
    %21 = vector.broadcast %20 : f32 to vector<1x128xf32>
    %22 = arith.addf %19, %21 : vector<1x128xf32>
    %23 = arith.negf %22 : vector<1x128xf32>
    %24 = math.exp %23 : vector<1x128xf32>
    %cst_17 = arith.constant 1.000000e+00 : f32
    %25 = vector.broadcast %cst_17 : f32 to vector<1x128xf32>
    %26 = arith.addf %25, %24 : vector<1x128xf32>
    %27 = arith.divf %25, %26 : vector<1x128xf32>
    %28 = vector.broadcast %27 : vector<1x128xf32> to vector<8x128xf32>
    %29 = arith.mulf %1, %28 : vector<8x128xf32>
    %c0_18 = arith.constant 0 : index
    %c0_19 = arith.constant 0 : index
    %c0_20 = arith.constant 0 : index
    %30 = vector.load %arg9[%c0_18, %c0_19, %c0_20] : memref<1x8x128xf32, #tpu.memory_space<vmem>>, vector<1x8x128xf32>
    %31 = vector.shape_cast %30 : vector<1x8x128xf32> to vector<8x128xf32>
    %32 = vector.shape_cast %29 : vector<8x128xf32> to vector<1x8x128xf32>
    tpu.vector_store %arg9[%c0_18, %c0_19, %c0_20], %32 {strides = array<i32>} : memref<1x8x128xf32, #tpu.memory_space<vmem>>, vector<1x8x128xf32>,
    return
  }
  func.func @transform_0(%arg0: i32, %arg1: i32) -> (i32, i32, i32) {
    %c0_i32 = arith.constant 0 : i32
    %c0_i32_0 = arith.constant 0 : i32
    return %arg0, %c0_i32, %arg1 : i32, i32, i32
  }
  func.func @transform_1(%arg0: i32, %arg1: i32) -> (i32, i32, i32) {
    %c0_i32 = arith.constant 0 : i32
    %c0_i32_0 = arith.constant 0 : i32
    return %arg0, %c0_i32, %arg1 : i32, i32, i32
  }
  func.func @transform_2(%arg0: i32, %arg1: i32) -> (i32, i32) {
    %c0_i32 = arith.constant 0 : i32
    %c0_i32_0 = arith.constant 0 : i32
    %c0_i32_1 = arith.constant 0 : i32
    return %c0_i32, %c0_i32_0 : i32, i32
  }
  func.func @transform_3(%arg0: i32, %arg1: i32) -> (i32, i32) {
    %c0_i32 = arith.constant 0 : i32
    %c0_i32_0 = arith.constant 0 : i32
    %c0_i32_1 = arith.constant 0 : i32
    return %c0_i32, %c0_i32_0 : i32, i32
  }
  func.func @transform_4(%arg0: i32, %arg1: i32) -> (i32, i32) {
    %c0_i32 = arith.constant 0 : i32
    %c0_i32_0 = arith.constant 0 : i32
    %c0_i32_1 = arith.constant 0 : i32
    return %c0_i32, %c0_i32_0 : i32, i32
  }
  func.func @transform_5(%arg0: i32, %arg1: i32) -> (i32, i32) {
    %c0_i32 = arith.constant 0 : i32
    %c0_i32_0 = arith.constant 0 : i32
    %c0_i32_1 = arith.constant 0 : i32
    return %c0_i32, %c0_i32_0 : i32, i32
  }
  func.func @transform_6(%arg0: i32, %arg1: i32) -> i32 {
    %c0_i32 = arith.constant 0 : i32
    %c0_i32_0 = arith.constant 0 : i32
    return %c0_i32 : i32
  }
  func.func @transform_7(%arg0: i32, %arg1: i32) -> (i32, i32, i32) {
    %c0_i32 = arith.constant 0 : i32
    %c0_i32_0 = arith.constant 0 : i32
    return %arg0, %c0_i32, %arg1 : i32, i32, i32
  }
}

</mosaic_0001>

<llo_original>
// kernel: tpu_custom_call.1
$region0: #{tpu_custom_call.1}
  #allocation0 [shape = 'u32[]', space=smem, size = 0x4, offset = 0x4, fixed_abs, tag = 'smem constant byte address 0x4 - core index']
  #allocation1 [shape = 'u32[144,128]{1,0:T(1,128)}', space=vmem, size = 0x12000, scoped, tag = 'internal scratch']
  %s0 = inlined_call_operand.hbm [shape: f32[2,8,256], index: 0, kind: input, shape index: {}]
  %s1 = inlined_call_operand.hbm [shape: f32[2,8,256], index: 1, kind: input, shape index: {}]
  %s2 = inlined_call_operand.vmem [shape: f32[2,8], index: 2, kind: input, shape index: {}]
  %s3 = inlined_call_operand.vmem [shape: f32[2,8], index: 3, kind: input, shape index: {}]
  %s4 = inlined_call_operand.vmem [shape: f32[2,1], index: 4, kind: input, shape index: {}]
  %s5 = inlined_call_operand.vmem [shape: f32[1,2], index: 5, kind: input, shape index: {}]
  %s6 = inlined_call_operand.vmem [shape: f32[2], index: 6, kind: input, shape index: {}]
  %s7 = inlined_call_operand.hbm [shape: f32[2,8,256], index: 7, kind: output, shape index: {}]
  %s8 = sld [smem:[#allocation0]]
  $region73: #{tpu_custom_call.1} parent=0
    _
  %s10 = ssub.s32 1, %s8
  %s11 = scalar_select 0, %s10, %s8
  $region1: #{tpu_custom_call.1} parent=0
    #allocation2 [shape = 'u8[8192]{0}', space=vmem, size = 0x2000, scoped, tag = 'input window, operand 0']
    #allocation3 [shape = 's32[2]{0}', space=sflag, size = 0x8, scoped, tag = 'scoped memory for tpu_custom_call.1']
    #allocation4 [shape = 's32[2]{0}', space=sflag, size = 0x8, scoped, tag = 'scoped memory for tpu_custom_call.1']
    #allocation5 [shape = 's32[2]{0}', space=sflag, size = 0x8, scoped, tag = 'scoped memory for tpu_custom_call.1']
    #allocation6 [shape = 'u8[8192]{0}', space=vmem, size = 0x2000, scoped, tag = 'input window, operand 1']
    #allocation7 [shape = 's32[2]{0}', space=sflag, size = 0x8, scoped, tag = 'scoped memory for tpu_custom_call.1']
    #allocation8 [shape = 'u8[512]{0}', space=smem, size = 0x200, scoped, tag = 'input window, operand 6, single buffered']
    #allocation9 [shape = 'u8[8192]{0}', space=vmem, size = 0x2000, scoped, tag = 'output window, operand 0']
    %12 = vsyncpa [#allocation3], 0
    %s13 = scalar_lea.sflag [#allocation3], 1
    %14 = vsyncpa %s13, 0
    %15 = vsyncpa [#allocation7], 0
    %s16 = scalar_lea.sflag [#allocation7], 1
    %17 = vsyncpa %s16, 0
    %18 = vsyncpa [#allocation5], 0
    %19 = vsyncpa [#allocation4], 0
    %s20 = scalar_lea.sflag [#allocation4], 1
    %21 = vsyncpa %s20, 0
    loop: start=0, step=1, limit=6
    $region2: #{tpu_custom_call.1} parent=1 // loop_pre_header
      _
    $region3: #{tpu_custom_call.1} parent=1 // loop_header
      %s23 = sphi 0, %s27
      %p24 = scmp.ge.s32.totalorder %s23, 6
      %s30 = sphi 0, %s42
      %s31 = sphi 0, %s38
      %s32 = sphi 0, %s30
      %s33 = sphi 0, %s31
      %s34 = sphi 0, %s32
      %s35 = sphi 0, %s33
      %s47 = sphi 0, %s49
      %s50 = sphi 0, %s47
      %s51 = sphi 0, %s50
      %s67 = sphi 0, %s51
      %s75 = sphi 0, %s77
      %s78 = sphi 0, %s75
      %s79 = sphi 0, %s78
      %s95 = sphi 0, %s79
      %s99 = sphi 0, %s99
      %s101 = sphi 0, %s99
      %s102 = sphi 0, %s101
      %s116 = sphi 0, %s102
      %s120 = sphi 0, %s120
      %s122 = sphi 0, %s120
      %s123 = sphi 0, %s122
      %s137 = sphi 0, %s123
      %s141 = sphi 0, %s141
      %s143 = sphi 0, %s141
      %s144 = sphi 0, %s143
      %s158 = sphi 0, %s144
      %s162 = sphi 0, %s162
      %s164 = sphi 0, %s162
      %s165 = sphi 0, %s164
      %s179 = sphi 0, %s165
      %s183 = sphi 0, %s183
      %s185 = sphi 0, %s183
      %s186 = sphi 0, %s185
      %s200 = sphi 0, %s186
      %s208 = sphi 0, %s210
      %s211 = sphi 0, %s208
      %s212 = sphi 0, %s211
      %s228 = sphi 0, %s212
    $region4: #{tpu_custom_call.1} parent=1 // loop_header_branch
      %26 = sbr.rel (%p24) target = $region8
    $region5: #{tpu_custom_call.1} parent=1 // loop_body
      %s28 = ssub.s32 %s23, 1
      %s29 = ssub.s32 %s23, 2
      %s36 = sadd.s32 1, %s31
      %p37 = scmp.ge.s32.totalorder %s36, 2
      %s38 = scalar_select %p37, 0, %s36
      %s39 = sadd.s32 1, %s30
      %s40 = scalar_select %p37, %s39, %s30
      %p41 = scmp.ge.s32.totalorder %s40, 2
      %s42 = scalar_select %p41, 0, %s40
      %s43 = ssub.s32 %s30, %s42
      %s44 = ssub.s32 %s31, %s38
      %s45 = sor.u32 %s43, %s44
      %p46 = scmp.eq.s32.totalorder %s45, 0
      %s48 = sadd.s32 %s47, 1
      %s49 = scalar_select %p46, %s47, %s48
      %p52 = pneg %p46
      %p53 = scmp.eq.s32.totalorder %s23, 3
      %p54 = por %p52, %p53
      %p55 = scmp.ne.s32.totalorder %s47, %s50
      %p56 = scmp.eq.s32.totalorder %s23, 0
      %p57 = por %p55, %p56
      %p58 = scmp.ne.s32.totalorder %s47, %s50
      %p59 = scmp.eq.s32.totalorder %s28, 3
      %p60 = por %p58, %p59
      %p61 = scmp.ne.s32.totalorder %s50, %s51
      %p62 = scmp.eq.s32.totalorder %s28, 0
      %p63 = por %p61, %p62
      %p64 = scmp.ne.s32.totalorder %s50, %s51
      %p65 = scmp.eq.s32.totalorder %s29, 3
      %p66 = por %p64, %p65
      %p68 = scmp.ne.s32.totalorder %s51, %s67
      %p69 = scmp.eq.s32.totalorder %s29, 0
      %p70 = por %p68, %p69
      %s71 = ssub.s32 %s30, %s42
      %s72 = ssub.s32 %s31, %s38
      %s73 = sor.u32 %s71, %s72
      %p74 = scmp.eq.s32.totalorder %s73, 0
      %s76 = sadd.s32 %s75, 1
      %s77 = scalar_select %p74, %s75, %s76
      %p80 = pneg %p74
      %p81 = scmp.eq.s32.totalorder %s23, 3
      %p82 = por %p80, %p81
      %p83 = scmp.ne.s32.totalorder %s75, %s78
      %p84 = scmp.eq.s32.totalorder %s23, 0
      %p85 = por %p83, %p84
      %p86 = scmp.ne.s32.totalorder %s75, %s78
      %p87 = scmp.eq.s32.totalorder %s28, 3
      %p88 = por %p86, %p87
      %p89 = scmp.ne.s32.totalorder %s78, %s79
      %p90 = scmp.eq.s32.totalorder %s28, 0
      %p91 = por %p89, %p90
      %p92 = scmp.ne.s32.totalorder %s78, %s79
      %p93 = scmp.eq.s32.totalorder %s29, 3
      %p94 = por %p92, %p93
      %p96 = scmp.ne.s32.totalorder %s79, %s95
      %p97 = scmp.eq.s32.totalorder %s29, 0
      %p98 = por %p96, %p97
      %s100 = sadd.s32 %s99, 1
      %p103 = scmp.eq.s32.totalorder %s23, 3
      %p104 = scmp.ne.s32.totalorder %s99, %s101
      %p105 = scmp.eq.s32.totalorder %s23, 0
      %p106 = por %p104, %p105
      %p107 = scmp.ne.s32.totalorder %s99, %s101
      %p108 = scmp.eq.s32.totalorder %s28, 3
      %p109 = por %p107, %p108
      %p110 = scmp.ne.s32.totalorder %s101, %s102
      %p111 = scmp.eq.s32.totalorder %s28, 0
      %p112 = por %p110, %p111
      %p113 = scmp.ne.s32.totalorder %s101, %s102
      %p114 = scmp.eq.s32.totalorder %s29, 3
      %p115 = por %p113, %p114
      %p117 = scmp.ne.s32.totalorder %s102, %s116
      %p118 = scmp.eq.s32.totalorder %s29, 0
      %p119 = por %p117, %p118
      %s121 = sadd.s32 %s120, 1
      %p124 = scmp.eq.s32.totalorder %s23, 3
      %p125 = scmp.ne.s32.totalorder %s120, %s122
      %p126 = scmp.eq.s32.totalorder %s23, 0
      %p127 = por %p125, %p126
      %p128 = scmp.ne.s32.totalorder %s120, %s122
      %p129 = scmp.eq.s32.totalorder %s28, 3
      %p130 = por %p128, %p129
      %p131 = scmp.ne.s32.totalorder %s122, %s123
      %p132 = scmp.eq.s32.totalorder %s28, 0
      %p133 = por %p131, %p132
      %p134 = scmp.ne.s32.totalorder %s122, %s123
      %p135 = scmp.eq.s32.totalorder %s29, 3
      %p136 = por %p134, %p135
      %p138 = scmp.ne.s32.totalorder %s123, %s137
      %p139 = scmp.eq.s32.totalorder %s29, 0
      %p140 = por %p138, %p139
      %s142 = sadd.s32 %s141, 1
      %p145 = scmp.eq.s32.totalorder %s23, 3
      %p146 = scmp.ne.s32.totalorder %s141, %s143
      %p147 = scmp.eq.s32.totalorder %s23, 0
      %p148 = por %p146, %p147
      %p149 = scmp.ne.s32.totalorder %s141, %s143
      %p150 = scmp.eq.s32.totalorder %s28, 3
      %p151 = por %p149, %p150
      %p152 = scmp.ne.s32.totalorder %s143, %s144
      %p153 = scmp.eq.s32.totalorder %s28, 0
      %p154 = por %p152, %p153
      %p155 = scmp.ne.s32.totalorder %s143, %s144
      %p156 = scmp.eq.s32.totalorder %s29, 3
      %p157 = por %p155, %p156
      %p159 = scmp.ne.s32.totalorder %s144, %s158
      %p160 = scmp.eq.s32.totalorder %s29, 0
      %p161 = por %p159, %p160
      %s163 = sadd.s32 %s162, 1
      %p166 = scmp.eq.s32.totalorder %s23, 3
      %p167 = scmp.ne.s32.totalorder %s162, %s164
      %p168 = scmp.eq.s32.totalorder %s23, 0
      %p169 = por %p167, %p168
      %p170 = scmp.ne.s32.totalorder %s162, %s164
      %p171 = scmp.eq.s32.totalorder %s28, 3
      %p172 = por %p170, %p171
      %p173 = scmp.ne.s32.totalorder %s164, %s165
      %p174 = scmp.eq.s32.totalorder %s28, 0
      %p175 = por %p173, %p174
      %p176 = scmp.ne.s32.totalorder %s164, %s165
      %p177 = scmp.eq.s32.totalorder %s29, 3
      %p178 = por %p176, %p177
      %p180 = scmp.ne.s32.totalorder %s165, %s179
      %p181 = scmp.eq.s32.totalorder %s29, 0
      %p182 = por %p180, %p181
      %s184 = sadd.s32 %s183, 1
      %p187 = scmp.eq.s32.totalorder %s23, 3
      %p188 = scmp.ne.s32.totalorder %s183, %s185
      %p189 = scmp.eq.s32.totalorder %s23, 0
      %p190 = por %p188, %p189
      %p191 = scmp.ne.s32.totalorder %s183, %s185
      %p192 = scmp.eq.s32.totalorder %s28, 3
      %p193 = por %p191, %p192
      %p194 = scmp.ne.s32.totalorder %s185, %s186
      %p195 = scmp.eq.s32.totalorder %s28, 0
      %p196 = por %p194, %p195
      %p197 = scmp.ne.s32.totalorder %s185, %s186
      %p198 = scmp.eq.s32.totalorder %s29, 3
      %p199 = por %p197, %p198
      %p201 = scmp.ne.s32.totalorder %s186, %s200
      %p202 = scmp.eq.s32.totalorder %s29, 0
      %p203 = por %p201, %p202
      %s204 = ssub.s32 %s30, %s42
      %s205 = ssub.s32 %s31, %s38
      %s206 = sor.u32 %s204, %s205
      %p207 = scmp.eq.s32.totalorder %s206, 0
      %s209 = sadd.s32 %s208, 1
      %s210 = scalar_select %p207, %s208, %s209
      %p213 = pneg %p207
      %p214 = scmp.eq.s32.totalorder %s23, 3
      %p215 = por %p213, %p214
      %p216 = scmp.ne.s32.totalorder %s208, %s211
      %p217 = scmp.eq.s32.totalorder %s23, 0
      %p218 = por %p216, %p217
      %p219 = scmp.ne.s32.totalorder %s208, %s211
      %p220 = scmp.eq.s32.totalorder %s28, 3
      %p221 = por %p219, %p220
      %p222 = scmp.ne.s32.totalorder %s211, %s212
      %p223 = scmp.eq.s32.totalorder %s28, 0
      %p224 = por %p222, %p223
      %p225 = scmp.ne.s32.totalorder %s211, %s212
      %p226 = scmp.eq.s32.totalorder %s29, 3
      %p227 = por %p225, %p226
      %p229 = scmp.ne.s32.totalorder %s212, %s228
      %p230 = scmp.eq.s32.totalorder %s29, 0
      %p231 = por %p229, %p230
      %p232 = scmp.le.s32.totalorder 1, %s23
      %p233 = scmp.lt.s32.totalorder %s23, 5
      %p234 = pnand %p232, %p233
      %p235 = pneg %p234
      // Predicated region
      $region9: #{tpu_custom_call.1} parent=5 // pred_check
        _
      $region10: #{tpu_custom_call.1} parent=5 // pred_check_branch
        %237 = sbr.rel (%p234) target = $region12
      $region11: #{tpu_custom_call.1} parent=5 // pred_region
        %s238 = ssub.s32 %s23, 1
        // Predicated region
        $region13: #{tpu_custom_call.1} parent=11 // pred_check
          %p239 = pneg %p112
        $region14: #{tpu_custom_call.1} parent=11 // pred_check_branch
          %241 = sbr.rel (%p239) target = $region16
        $region15: #{tpu_custom_call.1} parent=11 // pred_region
          _
        $region16: #{tpu_custom_call.1} parent=11 // pred_fallthru
          _
        // Predicated region
        $region17: #{tpu_custom_call.1} parent=11 // pred_check
          %p242 = pneg %p133
        $region18: #{tpu_custom_call.1} parent=11 // pred_check_branch
          %244 = sbr.rel (%p242) target = $region20
        $region19: #{tpu_custom_call.1} parent=11 // pred_region
          _
        $region20: #{tpu_custom_call.1} parent=11 // pred_fallthru
          _
        // Predicated region
        $region21: #{tpu_custom_call.1} parent=11 // pred_check
          %p245 = pneg %p154
        $region22: #{tpu_custom_call.1} parent=11 // pred_check_branch
          %247 = sbr.rel (%p245) target = $region24
        $region23: #{tpu_custom_call.1} parent=11 // pred_region
          _
        $region24: #{tpu_custom_call.1} parent=11 // pred_fallthru
          _
        // Predicated region
        $region25: #{tpu_custom_call.1} parent=11 // pred_check
          %p248 = pneg %p175
        $region26: #{tpu_custom_call.1} parent=11 // pred_check_branch
          %250 = sbr.rel (%p248) target = $region28
        $region27: #{tpu_custom_call.1} parent=11 // pred_region
          _
        $region28: #{tpu_custom_call.1} parent=11 // pred_fallthru
          _
        // Predicated region
        $region29: #{tpu_custom_call.1} parent=11 // pred_check
          %p251 = pneg %p196
        $region30: #{tpu_custom_call.1} parent=11 // pred_check_branch
          %253 = sbr.rel (%p251) target = $region32
        $region31: #{tpu_custom_call.1} parent=11 // pred_region
          %s255 = ssub.s32 16, 16
          %256 = vsyncadd [#allocation5], %s255
          %s258 = sshll.u32 %s6, 4
          %s259 = int_to_ptr.vmem [resolvable:$true] %s258
          %261 = dma.vmem_to_smem %s259, 16, [#allocation8], [#allocation5]
        $region32: #{tpu_custom_call.1} parent=11 // pred_fallthru
          _
      $region12: #{tpu_custom_call.1} parent=5 // pred_fallthru
        _
      %p262 = scmp.lt.s32.totalorder %s23, 4
      // Predicated region
      $region33: #{tpu_custom_call.1} parent=5 // pred_check
        %p263 = pneg %p262
      $region34: #{tpu_custom_call.1} parent=5 // pred_check_branch
        %265 = sbr.rel (%p263) target = $region36
      $region35: #{tpu_custom_call.1} parent=5 // pred_region
        // Predicated region
        $region37: #{tpu_custom_call.1} parent=35 // pred_check
          %p266 = pneg %p57
        $region38: #{tpu_custom_call.1} parent=35 // pred_check_branch
          %268 = sbr.rel (%p266) target = $region40
        $region39: #{tpu_custom_call.1} parent=35 // pred_region
          %s269 = sand.u32 %s47, 1
          %s270 = scalar_lea.sflag [#allocation3], %s269
          %s271 = sand.u32 %s47, 1
          %s272 = smul.addr %s271, 8
          %s273 = scalar_lea.vmem [#allocation2], %s272
          %s275 = ssub.s32 128, 128
          %276 = vsyncadd %s270, %s275
          %s277 = smul.addr %s30, 2
          %s278 = sadd.s32 %s31, %s277
          %s279 = smul.addr %s278, 128
          %s280 = scalar_lea.hbm %s0, %s279
          %s282 = sshll.u32 %s273, 4
          %s283 = int_to_ptr.vmem [resolvable:$true] %s282
          %285 = dma.hbm_to_vmem [thread:$0]  %s280, 128, %s283, %s270
        $region40: #{tpu_custom_call.1} parent=35 // pred_fallthru
          _
        // Predicated region
        $region41: #{tpu_custom_call.1} parent=35 // pred_check
          %p286 = pneg %p85
        $region42: #{tpu_custom_call.1} parent=35 // pred_check_branch
          %288 = sbr.rel (%p286) target = $region44
        $region43: #{tpu_custom_call.1} parent=35 // pred_region
          %s289 = sand.u32 %s75, 1
          %s290 = scalar_lea.sflag [#allocation7], %s289
          %s291 = sand.u32 %s75, 1
          %s292 = smul.addr %s291, 8
          %s293 = scalar_lea.vmem [#allocation6], %s292
          %s295 = ssub.s32 128, 128
          %296 = vsyncadd %s290, %s295
          %s297 = smul.addr %s30, 2
          %s298 = sadd.s32 %s31, %s297
          %s299 = smul.addr %s298, 128
          %s300 = scalar_lea.hbm %s1, %s299
          %s302 = sshll.u32 %s293, 4
          %s303 = int_to_ptr.vmem [resolvable:$true] %s302
          %305 = dma.hbm_to_vmem [thread:$0]  %s300, 128, %s303, %s290
        $region44: #{tpu_custom_call.1} parent=35 // pred_fallthru
          _
      $region36: #{tpu_custom_call.1} parent=5 // pred_fallthru
        _
      %p306 = scmp.le.s32.totalorder 1, %s23
      %p307 = scmp.lt.s32.totalorder %s23, 5
      %p308 = pnand %p306, %p307
      %p309 = pneg %p308
      // Predicated region
      $region45: #{tpu_custom_call.1} parent=5 // pred_check
        _
      $region46: #{tpu_custom_call.1} parent=5 // pred_check_branch
        %311 = sbr.rel (%p308) target = $region48
      $region47: #{tpu_custom_call.1} parent=5 // pred_region
        %s312 = ssub.s32 %s23, 1
        %s313 = sand.u32 %s50, 1
        %s314 = scalar_lea.sflag [#allocation3], %s313
        %s315 = sand.u32 %s50, 1
        %s316 = smul.addr %s315, 8
        %s317 = scalar_lea.vmem [#allocation2], %s316
        // Predicated region
        $region49: #{tpu_custom_call.1} parent=47 // pred_check
          %p318 = pneg %p63
        $region50: #{tpu_custom_call.1} parent=47 // pred_check_branch
          %320 = sbr.rel (%p318) target = $region52
        $region51: #{tpu_custom_call.1} parent=47 // pred_region
          %321 = dma.done %s314, 128
        $region52: #{tpu_custom_call.1} parent=47 // pred_fallthru
          _
        %s322 = sand.u32 %s78, 1
        %s323 = scalar_lea.sflag [#allocation7], %s322
        %s324 = sand.u32 %s78, 1
        %s325 = smul.addr %s324, 8
        %s326 = scalar_lea.vmem [#allocation6], %s325
        // Predicated region
        $region53: #{tpu_custom_call.1} parent=47 // pred_check
          %p327 = pneg %p91
        $region54: #{tpu_custom_call.1} parent=47 // pred_check_branch
          %329 = sbr.rel (%p327) target = $region56
        $region55: #{tpu_custom_call.1} parent=47 // pred_region
          %330 = dma.done %s323, 128
        $region56: #{tpu_custom_call.1} parent=47 // pred_fallthru
          _
        // Predicated region
        $region57: #{tpu_custom_call.1} parent=47 // pred_check
          %p331 = pneg %p196
        $region58: #{tpu_custom_call.1} parent=47 // pred_check_branch
          %333 = sbr.rel (%p331) target = $region60
        $region59: #{tpu_custom_call.1} parent=47 // pred_region
          %334 = dma.done [#allocation5], 16
        $region60: #{tpu_custom_call.1} parent=47 // pred_fallthru
          _
        %335 = sfence
        %s336 = sand.u32 %s50, 1
        %s337 = scalar_lea.sflag [#allocation3], %s336
        %s338 = sand.u32 %s50, 1
        %s339 = smul.addr %s338, 8
        %s340 = scalar_lea.vmem [#allocation2], %s339
        %p341 = pneg %p63
        %p342 = pneg %p60
        %s343 = sand.u32 %s78, 1
        %s344 = scalar_lea.sflag [#allocation7], %s343
        %s345 = sand.u32 %s78, 1
        %s346 = smul.addr %s345, 8
        %s347 = scalar_lea.vmem [#allocation6], %s346
        %p348 = pneg %p91
        %p349 = pneg %p88
        %p350 = pneg %p112
        %p351 = pneg %p109
        %p352 = pneg %p133
        %p353 = pneg %p130
        %p354 = pneg %p154
        %p355 = pneg %p151
        %p356 = pneg %p175
        %p357 = pneg %p172
        %p358 = pneg %p196
        %p359 = pneg %p193
        %p360 = pneg %p224
        %p361 = pneg %p221
        %s362 = sand.u32 %s211, 1
        %s363 = scalar_lea.sflag [#allocation4], %s362
        %s364 = sand.u32 %s211, 1
        %s365 = smul.addr %s364, 8
        %s366 = scalar_lea.vmem [#allocation9], %s365
        %v367 = vld [vmem:[%s317] sm:$0xff]
        %v368 = vld [vmem:[%s326] sm:$0xff]
        %v369 = vld [vmem:[%s2] sm:$0x3]
        %v370 = vld [vmem:[%s3] sm:$0x3]
        %vm371 = vcmask 64512
        %v373 = vsel %vm371, %v370, 0
        %375 = vmatprep.subr.mxu0 0.0
        %376 = vmatpush1.msra.mxu0 %v368
        %377 = vmatprep.subr.mxu0 0.0
        %378 = vmatpush1.msra.mxu0 0.0
        %379 = vmatprep.subr.mxu0 0.0
        %380 = vmatpush1.msra.mxu0 0.0
        %381 = vmatprep.subr.mxu0 0.0
        %382 = vmatpush1.msra.mxu0 0.0
        %383 = vmatprep.subr.mxu0 0.0
        %384 = vmatpush1.msra.mxu0 0.0
        %385 = vmatprep.subr.mxu0 0.0
        %386 = vmatpush1.msra.mxu0 0.0
        %387 = vmatprep.subr.mxu0 0.0
        %388 = vmatpush1.msra.mxu0 0.0
        %389 = vmatprep.subr.mxu0 0.0
        %390 = vmatpush1.msra.mxu0 0.0
        %391 = vmatprep.subr.mxu0 0.0
        %392 = vmatpush1.msra.mxu0 0.0
        %393 = vmatprep.subr.mxu0 0.0
        %394 = vmatpush1.msra.mxu0 0.0
        %395 = vmatprep.subr.mxu0 0.0
        %396 = vmatpush1.msra.mxu0 0.0
        %397 = vmatprep.subr.mxu0 0.0
        %398 = vmatpush1.msra.mxu0 0.0
        %399 = vmatprep.subr.mxu0 0.0
        %400 = vmatpush1.msra.mxu0 0.0
        %401 = vmatprep.subr.mxu0 0.0
        %402 = vmatpush1.msra.mxu0 0.0
        %403 = vmatprep.subr.mxu0 0.0
        %404 = vmatpush1.msra.mxu0 0.0
        %405 = vmatprep.subr.mxu0 0.0
        %406 = vmatpush1.msra.mxu0 0.0
        %407 = vmatprep.subr.mxu0 0.0
        %408 = vmatpush1.msra.mxu0 0.0
        %409 = vmatprep.subr.mxu0 0.0
        %410 = vmatpush1.msra.mxu0 0.0
        %411 = vmatprep.subr.mxu0 0.0
        %412 = vmatpush1.msra.mxu0 0.0
        %413 = vmatprep.subr.mxu0 0.0
        %414 = vmatpush1.msra.mxu0 0.0
        %415 = vmatprep.subr.mxu0 0.0
        %416 = vmatpush1.msra.mxu0 0.0
        %417 = vmatprep.subr.mxu0 0.0
        %418 = vmatpush1.msra.mxu0 0.0
        %419 = vmatprep.subr.mxu0 0.0
        %420 = vmatpush1.msra.mxu0 0.0
        %421 = vmatprep.subr.mxu0 0.0
        %422 = vmatpush1.msra.mxu0 0.0
        %423 = vmatprep.subr.mxu0 0.0
        %424 = vmatpush1.msra.mxu0 0.0
        %425 = vmatprep.subr.mxu0 0.0
        %426 = vmatpush1.msra.mxu0 0.0
        %427 = vmatprep.subr.mxu0 0.0
        %428 = vmatpush1.msra.mxu0 0.0
        %429 = vmatprep.subr.mxu0 0.0
        %430 = vmatpush1.msra.mxu0 0.0
        %431 = vmatprep.subr.mxu0 0.0
        %432 = vmatpush1.msra.mxu0 0.0
        %433 = vmatprep.subr.mxu0 0.0
        %434 = vmatpush1.msra.mxu0 0.0
        %435 = vmatprep.subr.mxu0 0.0
        %436 = vmatpush1.msra.mxu0 0.0
        %437 = vmatprep.subr.mxu0 0.0
        %438 = vmatpush1.msra.mxu0 0.0
        %439 = vmatprep.mubr.f32.mxu0 0.0
        %440 = vmatmul.mubr.f32.gmra.mrb[0].mxu0 %v373
        %v441 = vpop.f32.mrb[0].mxu0
        %v442 = vadd.f32 0.0, %v441
        %v443 = vpop.f32.mrb[0].mxu0
        %444 = vdwg.mxu0
        %v446 = vsel %vm371, %v369, 0
        %448 = vmatprep.subr.mxu0 0.0
        %449 = vmatpush1.msra.mxu0 %v367
        %450 = vmatprep.subr.mxu0 0.0
        %451 = vmatpush1.msra.mxu0 0.0
        %452 = vmatprep.subr.mxu0 0.0
        %453 = vmatpush1.msra.mxu0 0.0
        %454 = vmatprep.subr.mxu0 0.0
        %455 = vmatpush1.msra.mxu0 0.0
        %456 = vmatprep.subr.mxu0 0.0
        %457 = vmatpush1.msra.mxu0 0.0
        %458 = vmatprep.subr.mxu0 0.0
        %459 = vmatpush1.msra.mxu0 0.0
        %460 = vmatprep.subr.mxu0 0.0
        %461 = vmatpush1.msra.mxu0 0.0
        %462 = vmatprep.subr.mxu0 0.0
        %463 = vmatpush1.msra.mxu0 0.0
        %464 = vmatprep.subr.mxu0 0.0
        %465 = vmatpush1.msra.mxu0 0.0
        %466 = vmatprep.subr.mxu0 0.0
        %467 = vmatpush1.msra.mxu0 0.0
        %468 = vmatprep.subr.mxu0 0.0
        %469 = vmatpush1.msra.mxu0 0.0
        %470 = vmatprep.subr.mxu0 0.0
        %471 = vmatpush1.msra.mxu0 0.0
        %472 = vmatprep.subr.mxu0 0.0
        %473 = vmatpush1.msra.mxu0 0.0
        %474 = vmatprep.subr.mxu0 0.0
        %475 = vmatpush1.msra.mxu0 0.0
        %476 = vmatprep.subr.mxu0 0.0
        %477 = vmatpush1.msra.mxu0 0.0
        %478 = vmatprep.subr.mxu0 0.0
        %479 = vmatpush1.msra.mxu0 0.0
        %480 = vmatprep.subr.mxu0 0.0
        %481 = vmatpush1.msra.mxu0 0.0
        %482 = vmatprep.subr.mxu0 0.0
        %483 = vmatpush1.msra.mxu0 0.0
        %484 = vmatprep.subr.mxu0 0.0
        %485 = vmatpush1.msra.mxu0 0.0
        %486 = vmatprep.subr.mxu0 0.0
        %487 = vmatpush1.msra.mxu0 0.0
        %488 = vmatprep.subr.mxu0 0.0
        %489 = vmatpush1.msra.mxu0 0.0
        %490 = vmatprep.subr.mxu0 0.0
        %491 = vmatpush1.msra.mxu0 0.0
        %492 = vmatprep.subr.mxu0 0.0
        %493 = vmatpush1.msra.mxu0 0.0
        %494 = vmatprep.subr.mxu0 0.0
        %495 = vmatpush1.msra.mxu0 0.0
        %496 = vmatprep.subr.mxu0 0.0
        %497 = vmatpush1.msra.mxu0 0.0
        %498 = vmatprep.subr.mxu0 0.0
        %499 = vmatpush1.msra.mxu0 0.0
        %500 = vmatprep.subr.mxu0 0.0
        %501 = vmatpush1.msra.mxu0 0.0
        %502 = vmatprep.subr.mxu0 0.0
        %503 = vmatpush1.msra.mxu0 0.0
        %504 = vmatprep.subr.mxu0 0.0
        %505 = vmatpush1.msra.mxu0 0.0
        %506 = vmatprep.subr.mxu0 0.0
        %507 = vmatpush1.msra.mxu0 0.0
        %508 = vmatprep.subr.mxu0 0.0
        %509 = vmatpush1.msra.mxu0 0.0
        %510 = vmatprep.subr.mxu0 0.0
        %511 = vmatpush1.msra.mxu0 0.0
        %512 = vmatprep.mubr.f32.mxu0 0.0
        %513 = vmatmul.mubr.f32.gmra.mrb[0].mxu0 %v446
        %v514 = vpop.f32.mrb[0].mxu0
        %v515 = vadd.f32 %v442, %v514
        %v516 = vpop.f32.mrb[0].mxu0
        %517 = vdwg.mxu0
        %v518 = vld [vmem:[%s4] sm:$0x3]
        %520 = vset.pattern.permute.xlu0 0
        %521 = vperm.xlu0 %520, %v518
        %v522 = vpop.permute.xlu0 %521
        %v524 = vadd.f32 %v515, %v522
        %s525 = sld [smem:[#allocation8]]
        %vm526 = vcmp.ge.f32.partialorder %v524, 0.0
        %v527 = vstv %s525
        %v528 = vmul.f32 %v527, %v524
        %v529 = vsel %vm526, %v524, %v528
        %v530 = vld [vmem:[%s5] sm:$0x1]
        %s531 = sld [smem:[#allocation8 + $0x1]]
        %v532 = vstv %s531
        %vm533 = vcmask 15360
        %v535 = vsel %vm533, %v530, 0
        %vm537 = vcmask 1041408
        %v539 = vsel %vm537, %v529, 0
        %541 = vmatprep.subr.mxu0 0.0
        %542 = vmatpush1.msra.mxu0 %v539
        %543 = vmatprep.subr.mxu0 0.0
        %544 = vmatpush1.msra.mxu0 0.0
        %545 = vmatprep.subr.mxu0 0.0
        %546 = vmatpush1.msra.mxu0 0.0
        %547 = vmatprep.subr.mxu0 0.0
        %548 = vmatpush1.msra.mxu0 0.0
        %549 = vmatprep.subr.mxu0 0.0
        %550 = vmatpush1.msra.mxu0 0.0
        %551 = vmatprep.subr.mxu0 0.0
        %552 = vmatpush1.msra.mxu0 0.0
        %553 = vmatprep.subr.mxu0 0.0
        %554 = vmatpush1.msra.mxu0 0.0
        %555 = vmatprep.subr.mxu0 0.0
        %556 = vmatpush1.msra.mxu0 0.0
        %557 = vmatprep.subr.mxu0 0.0
        %558 = vmatpush1.msra.mxu0 0.0
        %559 = vmatprep.subr.mxu0 0.0
        %560 = vmatpush1.msra.mxu0 0.0
        %561 = vmatprep.subr.mxu0 0.0
        %562 = vmatpush1.msra.mxu0 0.0
        %563 = vmatprep.subr.mxu0 0.0
        %564 = vmatpush1.msra.mxu0 0.0
        %565 = vmatprep.subr.mxu0 0.0
        %566 = vmatpush1.msra.mxu0 0.0
        %567 = vmatprep.subr.mxu0 0.0
        %568 = vmatpush1.msra.mxu0 0.0
        %569 = vmatprep.subr.mxu0 0.0
        %570 = vmatpush1.msra.mxu0 0.0
        %571 = vmatprep.subr.mxu0 0.0
        %572 = vmatpush1.msra.mxu0 0.0
        %573 = vmatprep.subr.mxu0 0.0
        %574 = vmatpush1.msra.mxu0 0.0
        %575 = vmatprep.subr.mxu0 0.0
        %576 = vmatpush1.msra.mxu0 0.0
        %577 = vmatprep.subr.mxu0 0.0
        %578 = vmatpush1.msra.mxu0 0.0
        %579 = vmatprep.subr.mxu0 0.0
        %580 = vmatpush1.msra.mxu0 0.0
        %581 = vmatprep.subr.mxu0 0.0
        %582 = vmatpush1.msra.mxu0 0.0
        %583 = vmatprep.subr.mxu0 0.0
        %584 = vmatpush1.msra.mxu0 0.0
        %585 = vmatprep.subr.mxu0 0.0
        %586 = vmatpush1.msra.mxu0 0.0
        %587 = vmatprep.subr.mxu0 0.0
        %588 = vmatpush1.msra.mxu0 0.0
        %589 = vmatprep.subr.mxu0 0.0
        %590 = vmatpush1.msra.mxu0 0.0
        %591 = vmatprep.subr.mxu0 0.0
        %592 = vmatpush1.msra.mxu0 0.0
        %593 = vmatprep.subr.mxu0 0.0
        %594 = vmatpush1.msra.mxu0 0.0
        %595 = vmatprep.subr.mxu0 0.0
        %596 = vmatpush1.msra.mxu0 0.0
        %597 = vmatprep.subr.mxu0 0.0
        %598 = vmatpush1.msra.mxu0 0.0
        %599 = vmatprep.subr.mxu0 0.0
        %600 = vmatpush1.msra.mxu0 0.0
        %601 = vmatprep.subr.mxu0 0.0
        %602 = vmatpush1.msra.mxu0 0.0
        %603 = vmatprep.subr.mxu0 0.0
        %604 = vmatpush1.msra.mxu0 0.0
        %605 = vmatprep.mubr.f32.mxu0 0.0
        %606 = vmatmul.mubr.f32.gmra.mrb[0].mxu0 %v535
        %v607 = vpop.f32.mrb[0].mxu0
        %v608 = vadd.f32 %v532, %v607
        %v609 = vpop.f32.mrb[0].mxu0
        %610 = vdwg.mxu0
        %v611 = vxor.u32 %v608, 2147483648
        %v612 = vmul.f32 %v611, 1.442695
        %v613 = vpow.pop %v612
        %v614 = vadd.f32 %v613, 1.0
        %v615 = vrcp.pop %v614
        %v616 = vmul.f32 1.0, %v615
        %v617 = vlaneseq
        %v618 = vshrl.u32 %v617, 7
        %v619 = vsub.s32 0, %v618
        %v620 = vrot.slane %v616, %v619
        %v621 = vmul.f32 %v367, %v620
        %622 = vst [vmem:[%s366] sm:$0xff] %v621
        %s623 = sand.u32 %s211, 1
        %s624 = scalar_lea.sflag [#allocation4], %s623
        %s625 = sand.u32 %s211, 1
        %s626 = smul.addr %s625, 8
        %s627 = scalar_lea.vmem [#allocation9], %s626
        // Predicated region
        $region61: #{tpu_custom_call.1} parent=47 // pred_check
          %p628 = pneg %p221
        $region62: #{tpu_custom_call.1} parent=47 // pred_check_branch
          %630 = sbr.rel (%p628) target = $region64
        $region63: #{tpu_custom_call.1} parent=47 // pred_region
          %s632 = ssub.s32 128, 128
          %633 = vsyncadd %s624, %s632
          %s634 = smul.addr %s32, 2
          %s635 = sadd.s32 %s33, %s634
          %s636 = smul.addr %s635, 128
          %s637 = scalar_lea.hbm %s7, %s636
          %s639 = sshll.u32 %s627, 4
          %s640 = int_to_ptr.vmem [resolvable:$true] %s639
          %642 = dma.vmem_to_hbm [thread:$0]  %s640, 128, %s637, %s624
        $region64: #{tpu_custom_call.1} parent=47 // pred_fallthru
          _
      $region48: #{tpu_custom_call.1} parent=5 // pred_fallthru
        _
      %p643 = scmp.le.s32.totalorder 2, %s23
      // Predicated region
      $region65: #{tpu_custom_call.1} parent=5 // pred_check
        %p644 = pneg %p643
      $region66: #{tpu_custom_call.1} parent=5 // pred_check_branch
        %646 = sbr.rel (%p644) target = $region68
      $region67: #{tpu_custom_call.1} parent=5 // pred_region
        %s647 = ssub.s32 %s23, 2
        // Predicated region
        $region69: #{tpu_custom_call.1} parent=67 // pred_check
          %p648 = pneg %p227
        $region70: #{tpu_custom_call.1} parent=67 // pred_check_branch
          %650 = sbr.rel (%p648) target = $region72
        $region71: #{tpu_custom_call.1} parent=67 // pred_region
          %s651 = sand.u32 %s212, 1
          %s652 = scalar_lea.sflag [#allocation4], %s651
          %s653 = sand.u32 %s212, 1
          %s654 = smul.addr %s653, 8
          %s655 = scalar_lea.vmem [#allocation9], %s654
          %656 = dma.done %s652, 128
        $region72: #{tpu_custom_call.1} parent=67 // pred_fallthru
          _
      $region68: #{tpu_custom_call.1} parent=5 // pred_fallthru
        _
    $region6: #{tpu_custom_call.1} parent=1 // loop_footer
      %s27 = sadd.s32 1, %s23
    $region7: #{tpu_custom_call.1} parent=1 // loop_footer_branch
      %22 = sbr.rel target = $region3
    $region8: #{tpu_custom_call.1} parent=1 // loop_exit
      _
    %657 = vsyncpa [#allocation3], 1
    %s658 = scalar_lea.sflag [#allocation3], 1
    %659 = vsyncpa %s658, 1
    %660 = vsyncpa [#allocation7], 1
    %s661 = scalar_lea.sflag [#allocation7], 1
    %662 = vsyncpa %s661, 1
    %663 = vsyncpa [#allocation4], 1
    %s664 = scalar_lea.sflag [#allocation4], 1
    %665 = vsyncpa %s664, 1
    %666 = vsyncpa [#allocation5], 1
    %s667 = scalar_lea.sflag [#allocation5], 1
    %668 = vsyncpa %s667, 1

</llo_original>
